<compile_context>
chip_gen: v7x
topology: tpu7x:2x2x1
jax: 0.10.0
libtpu: 0.0.40
codegen_flags: <defaults>
</compile_context>

<pallas_src>
import math

import jax
import jax.numpy as jnp
from jax.experimental import pallas as pl
from jax.experimental.pallas import tpu as pltpu


def _copy_kernel(x_ref, o_ref):
    # identity copy of the current (row_tile, lane) window
    o_ref[...] = x_ref[...]


# Lane widths to try for the dense re-flow (largest first, all multiples of 128).
_LANE_CANDIDATES = (4096, 2048, 1024, 512, 256, 128)
# Per-grid-step block target.  ~0.35 us fixed step overhead: at 8 MiB the
# overhead is ~3% of the block's HBM time on v6e and ~7% on v7x (vs ~25-30%
# at 2 MiB blocks on v7x's 3.2 TB/s HBM).
_TARGET_BLOCK_BYTES = 8 * 1024 * 1024
_VMEM_HEADROOM_BYTES = 2 * 1024 * 1024


def _vmem_capacity_bytes():
    """Physical VMEM of the current chip (fallback: 128 MiB)."""
    try:
        return int(pltpu.get_tpu_info().vmem_capacity_bytes)
    except Exception:  # non-TPU backend / interpret mode
        return 128 * 1024 * 1024


def _sublane_quantum(itemsize):
    """Dtype-aware row quantum: 8 for f32, 16 for bf16, 32 for int8/fp8."""
    if itemsize >= 4:
        return 8
    return 8 * (4 // itemsize)


def _pick_row_tile(rows, lane, itemsize, target_block_bytes):
    quantum = _sublane_quantum(itemsize)
    row_tile = max(1, target_block_bytes // (lane * itemsize))
    row_tile = min(row_tile, rows)
    if rows >= quantum:
        # Full packed vregs / unmasked vst: round to the dtype sublane quantum.
        row_tile = max(quantum, (row_tile // quantum) * quantum)
        if rows % row_tile != 0:
            # Prefer an exact divisor of rows (no padded fetch / masked store
            # on the final step), searching downward in quantum steps, but
            # only if it keeps at least half the target block size.
            cand = row_tile
            while cand >= quantum:
                if rows % cand == 0:
                    if cand * 2 >= row_tile:
                        row_tile = cand
                    break
                cand -= quantum
    return row_tile


def batch_reshape(x, *target_shape, force_kernel=False):
    """Pallas equivalent of BatchReshape(*target_shape).forward(x)."""
    b = x.shape[0]
    n = math.prod(x.shape[1:])
    assert math.prod(target_shape) == n, (
        f"cannot reshape {x.shape[1:]} (={n} elems) into {target_shape}"
    )
    out_shape = (b,) + tuple(target_shape)

    # Default path at ANY size: batch-preserving reshape is metadata-only in
    # XLA, so the copy kernel would be pure overhead (2x total_bytes of HBM
    # traffic).  The kernel path is opt-in only.
    if not force_kernel:
        return x.reshape(out_shape)

    itemsize = jnp.dtype(x.dtype).itemsize
    total = b * n
    total_bytes = total * itemsize

    # --- Re-flow the flat buffer to a sublane/lane-dense 2D view -----------
    # A copy kernel does not care about logical layout, so pick the layout
    # the DMA/VPU likes: lane dim a big multiple of 128.
    lane = None
    for cand in _LANE_CANDIDATES:
        if total % cand == 0 and total // cand >= 8:
            lane = cand
            break
    if lane is None:
        for cand in _LANE_CANDIDATES:
            if total % cand == 0:
                lane = cand
                break
    if lane is None:
        # No lane-dense factorization exists; a copy kernel adds nothing over
        # the metadata-only reshape, so just do that (still correct).
        return x.reshape(out_shape)

    rows = total // lane

    # Generation-aware VMEM budget:
    #   v7x (64 MiB per TC)  -> scoped cap ~48 MiB
    #   v5e/v6e (128 MiB)    -> scoped cap ~96 MiB (don't leave it at 16/48)
    vmem_cap = _vmem_capacity_bytes()
    scoped_cap = min(96 * 1024 * 1024, (3 * vmem_cap) // 4)

    # Double-buffered in + out = ~4x block, plus headroom, must fit scoped cap.
    block_budget = max(128 * 1024, (scoped_cap - _VMEM_HEADROOM_BYTES) // 4)
    target_block_bytes = min(_TARGET_BLOCK_BYTES, block_budget)

    row_tile = _pick_row_tile(rows, lane, itemsize, target_block_bytes)
    grid = (pl.cdiv(rows, row_tile),)  # any ragged last block handled by Pallas

    block_bytes = row_tile * lane * itemsize
    vmem_limit = int(min(scoped_cap,
                         max(16 * 1024 * 1024,
                             4 * block_bytes + _VMEM_HEADROOM_BYTES)))

    x_flat = x.reshape(rows, lane)  # metadata-only in JAX

    out_flat = pl.pallas_call(
        _copy_kernel,
        out_shape=jax.ShapeDtypeStruct((rows, lane), x.dtype),
        grid_spec=pltpu.PrefetchScalarGridSpec(
            num_scalar_prefetch=0,
            grid=grid,
            in_specs=[pl.BlockSpec((row_tile, lane), lambda i: (i, 0))],
            out_specs=pl.BlockSpec((row_tile, lane), lambda i: (i, 0)),
        ),
        # Identity copy with identical in/out index maps: each block is read
        # before it is overwritten, so aliasing input->output is safe and
        # halves the HBM footprint when the caller donates x.
        input_output_aliases={0: 0},
        # Pure HBM traffic: let XLA's scheduler overlap surrounding ops.
        cost_estimate=pl.CostEstimate(
            flops=0, transcendentals=0, bytes_accessed=2 * total_bytes),
        compiler_params=pltpu.CompilerParams(
            # Parallel grid axis; harmless on v5e/v6e (1 TC).
            # TODO(synk): on v7x, verify via xprof that both TensorCores issue
            # DMAs; if not, switch to pltpu.CORE_PARALLEL / explicit core axis.
            dimension_semantics=("parallel",),
            vmem_limit_bytes=vmem_limit,
        ),
    )(x_flat)

    # Final reshape to (B, *target_shape) — metadata-only in JAX.
    return out_flat.reshape(out_shape)


if __name__ == "__main__":
    key = jax.random.PRNGKey(0)
    # Input (2, 4, 16, 16); BatchReshape(8, 128) -> output (2, 8, 128).
    x = jax.random.normal(key, (2, 4, 16, 16), dtype=jnp.float32)
    target_shape = (8, 128)
    ref = x.reshape((x.shape[0],) + target_shape)

    # 1) Default dispatch: metadata-only reshape (always, regardless of size).
    y_fast = jax.block_until_ready(batch_reshape(x, *target_shape))

    # 2) Force the Pallas kernel path so the TPU kernel compiles and runs.
    y_kern = jax.block_until_ready(
        batch_reshape(x, *target_shape, force_kernel=True)
    )

    for y in (y_fast, y_kern):
        assert y.shape == (2, 8, 128), y.shape
        assert y.dtype == x.dtype, y.dtype
        assert bool(jnp.array_equal(y, ref)), "mismatch vs reference reshape"

    print("KERNEL_OK")
</pallas_src>

<mosaic_0001>
module attributes {stable_mosaic.version = 11 : i64} {
  func.func @_copy_kernel(%arg0: i32, %arg1: memref<8x256xf32, #tpu.memory_space<vmem>>, %arg2: memref<8x256xf32, #tpu.memory_space<vmem>>) attributes {dimension_semantics = [#tpu.dimension_semantics<parallel>], iteration_bounds = array<i64: 1>, scalar_prefetch = 0 : i64, scratch_operands = 0 : i64, tpu.core_type = #tpu.core_type<tc>, window_params = [{transform_indices = @transform_0, window_bounds = array<i64: 8, 256>}, {transform_indices = @transform_1, window_bounds = array<i64: 8, 256>}]} {
    %c0 = arith.constant 0 : index
    %c0_0 = arith.constant 0 : index
    %0 = vector.load %arg1[%c0, %c0_0] : memref<8x256xf32, #tpu.memory_space<vmem>>, vector<8x256xf32>
    %c0_1 = arith.constant 0 : index
    %c0_2 = arith.constant 0 : index
    %1 = vector.load %arg2[%c0_1, %c0_2] : memref<8x256xf32, #tpu.memory_space<vmem>>, vector<8x256xf32>
    tpu.vector_store %arg2[%c0_1, %c0_2], %0 {strides = array<i32>} : memref<8x256xf32, #tpu.memory_space<vmem>>, vector<8x256xf32>,
    return
  }
  func.func @transform_0(%arg0: i32) -> (i32, i32) {
    %c0_i32 = arith.constant 0 : i32
    %c0_i32_0 = arith.constant 0 : i32
    return %arg0, %c0_i32 : i32, i32
  }
  func.func @transform_1(%arg0: i32) -> (i32, i32) {
    %c0_i32 = arith.constant 0 : i32
    %c0_i32_0 = arith.constant 0 : i32
    return %arg0, %c0_i32 : i32, i32
  }
}

</mosaic_0001>

<llo_original>
// kernel: tpu_custom_call.1
$region0: #{tpu_custom_call.1}
  #allocation0 [shape = 'u32[]', space=smem, size = 0x4, offset = 0x4, fixed_abs, tag = 'smem constant byte address 0x4 - core index']
  #allocation1 [shape = 'u32[144,128]{1,0:T(1,128)}', space=vmem, size = 0x12000, scoped, tag = 'internal scratch']
  %s0 = inlined_call_operand.hbm [shape: f32[8,256], index: 0, kind: input, shape index: {}, may-alias: {0,1}]
  %s1 = inlined_call_operand.hbm [shape: f32[8,256], index: 1, kind: output, shape index: {}, may-alias: {0,1}]
  %s2 = sld [smem:[#allocation0]]
  $region18: #{tpu_custom_call.1} parent=0
    _
  %s4 = ssub.s32 1, %s2
  %s5 = scalar_select 0, %s4, %s2
  $region1: #{tpu_custom_call.1} parent=0
    #allocation2 [shape = 'u8[8192]{0}', space=vmem, size = 0x2000, scoped, tag = 'input window, operand 0, single buffered']
    #allocation3 [shape = 's32[1]{0}', space=sflag, size = 0x4, scoped, tag = 'scoped memory for tpu_custom_call.1']
    #allocation4 [shape = 's32[1]{0}', space=sflag, size = 0x4, scoped, tag = 'scoped memory for tpu_custom_call.1']
    #allocation5 [shape = 'u8[8192]{0}', space=vmem, size = 0x2000, scoped, tag = 'output window, operand 0, single buffered']
    %6 = vsyncpa [#allocation3], 0
    %7 = vsyncpa [#allocation4], 0
    // Predicated region
    $region2: #{tpu_custom_call.1} parent=1 // pred_check
      _
    $region3: #{tpu_custom_call.1} parent=1 // pred_check_branch
      %9 = sbr.rel (0) target = $region5
    $region4: #{tpu_custom_call.1} parent=1 // pred_region
      %s11 = ssub.s32 256, 256
      %12 = vsyncadd [#allocation3], %s11
      %s14 = sshll.u32 [#allocation2], 4
      %s15 = int_to_ptr.vmem [resolvable:$true] %s14
      %17 = dma.hbm_to_vmem [thread:$0]  %s0, 256, %s15, [#allocation3]
    $region5: #{tpu_custom_call.1} parent=1 // pred_fallthru
      _
    // Predicated region
    $region6: #{tpu_custom_call.1} parent=1 // pred_check
      _
    $region7: #{tpu_custom_call.1} parent=1 // pred_check_branch
      %19 = sbr.rel (0) target = $region9
    $region8: #{tpu_custom_call.1} parent=1 // pred_region
      %20 = dma.done [#allocation3], 256
    $region9: #{tpu_custom_call.1} parent=1 // pred_fallthru
      _
    %v21 = vld [vmem:[#allocation2] sm:$0xff]
    %v22 = vld [vmem:[#allocation2 + $0x8] sm:$0xff]
    %23 = vst [vmem:[#allocation5] sm:$0xff] %v21
    %24 = vst [vmem:[#allocation5 + $0x8] sm:$0xff] %v22
    // Predicated region
    $region10: #{tpu_custom_call.1} parent=1 // pred_check
      _
    $region11: #{tpu_custom_call.1} parent=1 // pred_check_branch
      %26 = sbr.rel (0) target = $region13
    $region12: #{tpu_custom_call.1} parent=1 // pred_region
      %s28 = ssub.s32 256, 256
      %29 = vsyncadd [#allocation4], %s28
      %s31 = sshll.u32 [#allocation5], 4
      %s32 = int_to_ptr.vmem [resolvable:$true] %s31
      %34 = dma.vmem_to_hbm [thread:$0]  %s32, 256, %s1, [#allocation4]
    $region13: #{tpu_custom_call.1} parent=1 // pred_fallthru
      _
    // Predicated region
    $region14: #{tpu_custom_call.1} parent=1 // pred_check
      _
    $region15: #{tpu_custom_call.1} parent=1 // pred_check_branch
      %36 = sbr.rel (0) target = $region17
    $region16: #{tpu_custom_call.1} parent=1 // pred_region
      %37 = dma.done [#allocation4], 256
    $region17: #{tpu_custom_call.1} parent=1 // pred_fallthru
      _
    %38 = vsyncpa [#allocation3], 1
    %39 = vsyncpa [#allocation4], 1

</llo_original>
